<compile_context>
chip_gen: v7x
topology: tpu7x:2x2x1
jax: 0.10.0
libtpu: 0.0.40
codegen_flags: <defaults>
</compile_context>

<pallas_src>
from functools import partial

import jax
import jax.numpy as jnp
from jax import lax
from jax.experimental import pallas as pl
from jax.experimental.pallas import tpu as pltpu

IN_F, H1_F, H2_F, OUT_F = 20, 16, 8, 4


def _round_up(v, m):
    return ((v + m - 1) // m) * m


def mlp_kernel(x_ref, w1_ref, b1_ref, w2_ref, b2_ref, w3_ref, b3_ref, out_ref,
               *, batch_major_output):
    # One batch tile per grid step.  Weights/biases have constant index maps,
    # so they stay VMEM-resident across the whole grid.
    # x arrives row-major (TB, IN_F) straight from HBM (no wrapper transpose).
    x = x_ref[...].astype(w1_ref.dtype)

    # fc1: (H1, IN) contracted with (TB, IN) on the feature axis -> (H1, TB).
    # Batch lands on the 128-lane axis; the MXU handles the transposed RHS.
    h1 = lax.dot_general(w1_ref[...], x, (((1,), (1,)), ((), ())),
                         preferred_element_type=jnp.float32)
    h1 = jnp.maximum(h1 + b1_ref[...], 0.0)

    # fc2 / fc3: canonical (m,k) x (k,n) matmuls, batch stays on lanes.
    h2 = lax.dot_general(w2_ref[...], h1, (((1,), (0,)), ((), ())),
                         preferred_element_type=jnp.float32)
    h2 = jnp.maximum(h2 + b2_ref[...], 0.0)

    logits = lax.dot_general(w3_ref[...], h2, (((1,), (0,)), ((), ())),
                             preferred_element_type=jnp.float32) + b3_ref[...]

    # Numerically-stable softmax over the feature axis (PyTorch dim=1):
    # a 4-row sublane reduction per batch column.
    m = jnp.max(logits, axis=0, keepdims=True)
    e = jnp.exp(logits - m)
    denom = jnp.sum(e, axis=0, keepdims=True)
    probs = e / denom  # exact divide: rows sum to 1 to f32 precision

    if batch_major_output:
        # Single small in-kernel XLU transpose of the (OUT_F, TB) result; keeps
        # the PyTorch (B, 4) layout without a wrapper-side HBM transpose pass.
        out_ref[...] = probs.T.astype(out_ref.dtype)
    else:
        # Lane-dense (OUT_F, TB) store: unmasked vst, minimal VMEM footprint.
        out_ref[...] = probs.astype(out_ref.dtype)


def mlp_forward(x, params, *, tile_batch=8192, batch_major_output=True,
                out_dtype=jnp.float32):
    """Forward pass. x: (B, 20) -> (B, 4) softmax probabilities.

    batch_major_output=False returns the transposed (4, B) layout instead
    (lane-dense output store) for callers that can consume it directly.
    bf16 inputs are streamed as-is (no wrapper-side cast pass).
    """
    w1, b1, w2, b2, w3, b3 = params
    B, F = x.shape
    assert F == IN_F, f"expected {IN_F} input features, got {F}"

    # Batch-tile alignment: sublane (8) granularity when TB is the second-minor
    # dim of the output block, lane (128) granularity when TB is its minor dim.
    align = 8 if batch_major_output else 128
    tb = _round_up(min(tile_batch, _round_up(B, align)), align)
    # v7x megacore: make sure both TensorCores get at least one tile.
    if B >= 2 * align and pl.cdiv(B, tb) < 2:
        tb = _round_up(pl.cdiv(B, 2), align)
    grid = (pl.cdiv(B, tb),)  # no wrapper pad: Pallas clips the partial last block

    x_isz = jnp.dtype(x.dtype).itemsize
    out_isz = jnp.dtype(out_dtype).itemsize

    def tile_bytes(rows, cols, isz):
        # VMEM tiles are padded to (8, 128) granularity.
        return _round_up(rows, 8) * _round_up(cols, 128) * isz

    if batch_major_output:
        out_shape = jax.ShapeDtypeStruct((B, OUT_F), out_dtype)
        out_spec = pl.BlockSpec((tb, OUT_F), lambda i: (i, 0))
        out_blk = tile_bytes(tb, OUT_F, out_isz)
        extra_inter = tile_bytes(tb, OUT_F, 4)  # transposed tile before the store
    else:
        out_shape = jax.ShapeDtypeStruct((OUT_F, B), out_dtype)
        out_spec = pl.BlockSpec((OUT_F, tb), lambda i: (0, i))
        out_blk = tile_bytes(OUT_F, tb, out_isz)
        extra_inter = 0

    inter_bytes = (tile_bytes(H1_F, tb, 4) + tile_bytes(H2_F, tb, 4)
                   + 3 * tile_bytes(OUT_F, tb, 4) + extra_inter)
    vmem_needed = (2 * tile_bytes(tb, IN_F, x_isz)   # double-buffered x blocks
                   + 2 * out_blk                     # double-buffered out blocks
                   + inter_bytes                     # f32 intermediates
                   + 64 * 1024)                      # weights/biases + slack
    # 1.5x headroom, capped at v7x's 64 MiB physical VMEM.
    vmem_limit = int(min(64 << 20, max(8 << 20, (3 * vmem_needed) // 2)))

    n_mac = IN_F * H1_F + H1_F * H2_F + H2_F * OUT_F
    const2 = lambda i: (0, 0)  # weights/biases: same block every step -> resident

    out = pl.pallas_call(
        partial(mlp_kernel, batch_major_output=batch_major_output),
        out_shape=out_shape,
        grid=grid,
        in_specs=[
            pl.BlockSpec((tb, IN_F), lambda i: (i, 0)),   # x: streamed per tile
            pl.BlockSpec((H1_F, IN_F), const2),           # w1 (out, in)
            pl.BlockSpec((H1_F, 1), const2),              # b1 (out, 1)
            pl.BlockSpec((H2_F, H1_F), const2),           # w2
            pl.BlockSpec((H2_F, 1), const2),              # b2
            pl.BlockSpec((OUT_F, H2_F), const2),          # w3
            pl.BlockSpec((OUT_F, 1), const2),             # b3
        ],
        out_specs=out_spec,
        compiler_params=pltpu.CompilerParams(
            dimension_semantics=("parallel",),  # batch tiles shard across TCs
            vmem_limit_bytes=vmem_limit,
        ),
        cost_estimate=pl.CostEstimate(
            flops=2 * B * n_mac,
            transcendentals=B * OUT_F,  # exp per logit
            bytes_accessed=(B * IN_F * x_isz + B * OUT_F * out_isz
                            + (n_mac + H1_F + H2_F + OUT_F) * 4),
        ),
    )(x, w1, b1, w2, b2, w3, b3)
    return out


def init_params(key):
    """Deterministic init mimicking nn.Linear's U(-1/sqrt(in), 1/sqrt(in)).
    Weights stored in PyTorch layout (out, in); biases as (out, 1)."""
    def linear(key, fan_in, fan_out):
        kw, kb = jax.random.split(key)
        bound = fan_in ** -0.5
        w = jax.random.uniform(kw, (fan_out, fan_in), jnp.float32, -bound, bound)
        b = jax.random.uniform(kb, (fan_out, 1), jnp.float32, -bound, bound)
        return w, b

    k1, k2, k3 = jax.random.split(key, 3)
    w1, b1 = linear(k1, IN_F, H1_F)
    w2, b2 = linear(k2, H1_F, H2_F)
    w3, b3 = linear(k3, H2_F, OUT_F)
    return (w1, b1, w2, b2, w3, b3)


def reference_forward(x, params):
    """Pure-JAX reference for correctness checking."""
    w1, b1, w2, b2, w3, b3 = params
    h1 = jnp.maximum(x @ w1.T + b1[:, 0], 0.0)
    h2 = jnp.maximum(h1 @ w2.T + b2[:, 0], 0.0)
    logits = h2 @ w3.T + b3[:, 0]
    return jax.nn.softmax(logits, axis=1)


if __name__ == "__main__":
    key = jax.random.PRNGKey(0)
    kx, kp = jax.random.split(key)
    params = init_params(kp)

    # Small case consistent with the module: (batch=8, features=20).
    x_small = jax.random.normal(kx, (8, IN_F), dtype=jnp.float32)
    out_small = jax.block_until_ready(mlp_forward(x_small, params))
    ref_small = reference_forward(x_small, params)
    assert out_small.shape == (8, OUT_F)
    assert jnp.allclose(out_small, ref_small, atol=2e-3, rtol=2e-3), "small-batch mismatch"
    # Exact softmax normalization (no approx reciprocal anymore).
    assert jnp.allclose(jnp.sum(out_small, axis=1), 1.0, atol=1e-4), "rows must sum to ~1"

    # Multi-tile grid with a partial last block (no wrapper pad / output slice).
    x_big = jax.random.normal(kx, (1000, IN_F), dtype=jnp.float32)
    ref_big = reference_forward(x_big, params)
    out_big = jax.block_until_ready(mlp_forward(x_big, params, tile_batch=256))
    assert out_big.shape == (1000, OUT_F)
    assert jnp.allclose(out_big, ref_big, atol=2e-3, rtol=2e-3), "tiled-batch mismatch"

    # Lane-dense (features, batch) output layout (fastest store path).
    out_fm = jax.block_until_ready(
        mlp_forward(x_big, params, tile_batch=256, batch_major_output=False))
    assert out_fm.shape == (OUT_F, 1000)
    assert jnp.allclose(out_fm.T, ref_big, atol=2e-3, rtol=2e-3), "transposed-output mismatch"

    # bf16 input supplied natively by the caller (no wrapper-side cast pass;
    # the kernel upcasts the streamed tile in VMEM).
    x_bf16 = jax.random.normal(kx, (1000, IN_F), dtype=jnp.bfloat16)
    ref_bf16 = reference_forward(x_bf16.astype(jnp.float32), params)
    out_bf16 = jax.block_until_ready(mlp_forward(x_bf16, params))
    assert out_bf16.shape == (1000, OUT_F)
    assert jnp.allclose(out_bf16, ref_bf16, atol=5e-3, rtol=5e-3), "bf16-input mismatch"

    print("KERNEL_OK")
</pallas_src>

<mosaic_0001>
module attributes {stable_mosaic.version = 11 : i64} {
  func.func @mlp_kernel(%arg0: i32, %arg1: memref<8x20xf32, #tpu.memory_space<vmem>>, %arg2: memref<16x20xf32, #tpu.memory_space<vmem>>, %arg3: memref<16x1xf32, #tpu.memory_space<vmem>>, %arg4: memref<8x16xf32, #tpu.memory_space<vmem>>, %arg5: memref<8x1xf32, #tpu.memory_space<vmem>>, %arg6: memref<4x8xf32, #tpu.memory_space<vmem>>, %arg7: memref<4x1xf32, #tpu.memory_space<vmem>>, %arg8: memref<8x4xf32, #tpu.memory_space<vmem>>) attributes {dimension_semantics = [#tpu.dimension_semantics<parallel>], iteration_bounds = array<i64: 1>, scalar_prefetch = 0 : i64, scratch_operands = 0 : i64, tpu.core_type = #tpu.core_type<tc>, window_params = [{transform_indices = @transform_0, window_bounds = array<i64: 8, 20>}, {pipeline_mode = #tpu.pipeline_mode<synchronous>, transform_indices = @transform_1, window_bounds = array<i64: 16, 20>}, {pipeline_mode = #tpu.pipeline_mode<synchronous>, transform_indices = @transform_2, window_bounds = array<i64: 16, 1>}, {pipeline_mode = #tpu.pipeline_mode<synchronous>, transform_indices = @transform_3, window_bounds = array<i64: 8, 16>}, {pipeline_mode = #tpu.pipeline_mode<synchronous>, transform_indices = @transform_4, window_bounds = array<i64: 8, 1>}, {pipeline_mode = #tpu.pipeline_mode<synchronous>, transform_indices = @transform_5, window_bounds = array<i64: 4, 8>}, {pipeline_mode = #tpu.pipeline_mode<synchronous>, transform_indices = @transform_6, window_bounds = array<i64: 4, 1>}, {transform_indices = @transform_7, window_bounds = array<i64: 8, 4>}]} {
    %c0 = arith.constant 0 : index
    %c0_0 = arith.constant 0 : index
    %0 = vector.load %arg1[%c0, %c0_0] : memref<8x20xf32, #tpu.memory_space<vmem>>, vector<8x20xf32>
    %c0_1 = arith.constant 0 : index
    %c0_2 = arith.constant 0 : index
    %1 = vector.load %arg2[%c0_1, %c0_2] : memref<16x20xf32, #tpu.memory_space<vmem>>, vector<16x20xf32>
    %cst = arith.constant dense<0.000000e+00> : vector<16x8xf32>
    %2 = tpu.matmul %1, %0, %cst {dimension_numbers = #tpu.dot_dimension_numbers<[1], [1], [0], [0], [0, 0, 1, 0], [], []>} : vector<16x20xf32>, vector<8x20xf32>, vector<16x8xf32> -> vector<16x8xf32>
    %c0_3 = arith.constant 0 : index
    %c0_4 = arith.constant 0 : index
    %3 = vector.load %arg3[%c0_3, %c0_4] : memref<16x1xf32, #tpu.memory_space<vmem>>, vector<16x1xf32>
    %4 = vector.broadcast %3 : vector<16x1xf32> to vector<16x8xf32>
    %5 = arith.addf %2, %4 : vector<16x8xf32>
    %cst_5 = arith.constant 0.000000e+00 : f32
    %6 = vector.broadcast %cst_5 : f32 to vector<16x8xf32>
    %7 = arith.maximumf %5, %6 : vector<16x8xf32>
    %c0_6 = arith.constant 0 : index
    %c0_7 = arith.constant 0 : index
    %8 = vector.load %arg4[%c0_6, %c0_7] : memref<8x16xf32, #tpu.memory_space<vmem>>, vector<8x16xf32>
    %cst_8 = arith.constant dense<0.000000e+00> : vector<8x8xf32>
    %9 = tpu.matmul %8, %7, %cst_8 {dimension_numbers = #tpu.dot_dimension_numbers<[1], [0], [0], [1], [0, 0, 1, 1], [], []>} : vector<8x16xf32>, vector<16x8xf32>, vector<8x8xf32> -> vector<8x8xf32>
    %c0_9 = arith.constant 0 : index
    %c0_10 = arith.constant 0 : index
    %10 = vector.load %arg5[%c0_9, %c0_10] : memref<8x1xf32, #tpu.memory_space<vmem>>, vector<8x1xf32>
    %11 = vector.broadcast %10 : vector<8x1xf32> to vector<8x8xf32>
    %12 = arith.addf %9, %11 : vector<8x8xf32>
    %cst_11 = arith.constant 0.000000e+00 : f32
    %13 = vector.broadcast %cst_11 : f32 to vector<8x8xf32>
    %14 = arith.maximumf %12, %13 : vector<8x8xf32>
    %c0_12 = arith.constant 0 : index
    %c0_13 = arith.constant 0 : index
    %15 = vector.load %arg6[%c0_12, %c0_13] : memref<4x8xf32, #tpu.memory_space<vmem>>, vector<4x8xf32>
    %cst_14 = arith.constant dense<0.000000e+00> : vector<4x8xf32>
    %16 = tpu.matmul %15, %14, %cst_14 {dimension_numbers = #tpu.dot_dimension_numbers<[1], [0], [0], [1], [0, 0, 1, 1], [], []>} : vector<4x8xf32>, vector<8x8xf32>, vector<4x8xf32> -> vector<4x8xf32>
    %c0_15 = arith.constant 0 : index
    %c0_16 = arith.constant 0 : index
    %17 = vector.load %arg7[%c0_15, %c0_16] : memref<4x1xf32, #tpu.memory_space<vmem>>, vector<4x1xf32>
    %18 = vector.broadcast %17 : vector<4x1xf32> to vector<4x8xf32>
    %19 = arith.addf %16, %18 : vector<4x8xf32>
    %cst_17 = arith.constant dense<0xFF800000> : vector<8xf32>
    %20 = vector.multi_reduction <maximumf>, %19, %cst_17 [0] : vector<4x8xf32> to vector<8xf32>
    %21 = vector.shape_cast %20 : vector<8xf32> to vector<1x8xf32>
    %22 = vector.broadcast %21 : vector<1x8xf32> to vector<4x8xf32>
    %23 = arith.subf %19, %22 : vector<4x8xf32>
    %24 = math.exp %23 : vector<4x8xf32>
    %cst_18 = arith.constant dense<0.000000e+00> : vector<8xf32>
    %25 = vector.multi_reduction <add>, %24, %cst_18 [0] : vector<4x8xf32> to vector<8xf32>
    %26 = vector.shape_cast %25 : vector<8xf32> to vector<1x8xf32>
    %27 = vector.broadcast %26 : vector<1x8xf32> to vector<4x8xf32>
    %28 = arith.divf %24, %27 : vector<4x8xf32>
    %29 = tpu.transpose %28, [1, 0] : vector<4x8xf32> -> vector<8x4xf32>
    %c0_19 = arith.constant 0 : index
    %c0_20 = arith.constant 0 : index
    %30 = vector.load %arg8[%c0_19, %c0_20] : memref<8x4xf32, #tpu.memory_space<vmem>>, vector<8x4xf32>
    tpu.vector_store %arg8[%c0_19, %c0_20], %29 {strides = array<i32>} : memref<8x4xf32, #tpu.memory_space<vmem>>, vector<8x4xf32>,
    return
  }
  func.func @transform_0(%arg0: i32) -> (i32, i32) {
    %c0_i32 = arith.constant 0 : i32
    %c0_i32_0 = arith.constant 0 : i32
    return %arg0, %c0_i32 : i32, i32
  }
  func.func @transform_1(%arg0: i32) -> (i32, i32) {
    %c0_i32 = arith.constant 0 : i32
    %c0_i32_0 = arith.constant 0 : i32
    %c0_i32_1 = arith.constant 0 : i32
    return %c0_i32, %c0_i32_0 : i32, i32
  }
  func.func @transform_2(%arg0: i32) -> (i32, i32) {
    %c0_i32 = arith.constant 0 : i32
    %c0_i32_0 = arith.constant 0 : i32
    %c0_i32_1 = arith.constant 0 : i32
    return %c0_i32, %c0_i32_0 : i32, i32
  }
  func.func @transform_3(%arg0: i32) -> (i32, i32) {
    %c0_i32 = arith.constant 0 : i32
    %c0_i32_0 = arith.constant 0 : i32
    %c0_i32_1 = arith.constant 0 : i32
    return %c0_i32, %c0_i32_0 : i32, i32
  }
  func.func @transform_4(%arg0: i32) -> (i32, i32) {
    %c0_i32 = arith.constant 0 : i32
    %c0_i32_0 = arith.constant 0 : i32
    %c0_i32_1 = arith.constant 0 : i32
    return %c0_i32, %c0_i32_0 : i32, i32
  }
  func.func @transform_5(%arg0: i32) -> (i32, i32) {
    %c0_i32 = arith.constant 0 : i32
    %c0_i32_0 = arith.constant 0 : i32
    %c0_i32_1 = arith.constant 0 : i32
    return %c0_i32, %c0_i32_0 : i32, i32
  }
  func.func @transform_6(%arg0: i32) -> (i32, i32) {
    %c0_i32 = arith.constant 0 : i32
    %c0_i32_0 = arith.constant 0 : i32
    %c0_i32_1 = arith.constant 0 : i32
    return %c0_i32, %c0_i32_0 : i32, i32
  }
  func.func @transform_7(%arg0: i32) -> (i32, i32) {
    %c0_i32 = arith.constant 0 : i32
    %c0_i32_0 = arith.constant 0 : i32
    return %arg0, %c0_i32 : i32, i32
  }
}

</mosaic_0001>

<llo_original>
// kernel: tpu_custom_call.1
$region0: #{tpu_custom_call.1}
  #allocation0 [shape = 'u32[]', space=smem, size = 0x4, offset = 0x4, fixed_abs, tag = 'smem constant byte address 0x4 - core index']
  #allocation1 [shape = 'u32[144,128]{1,0:T(1,128)}', space=vmem, size = 0x12000, scoped, tag = 'internal scratch']
  %s0 = inlined_call_operand.vmem [shape: f32[8,20], index: 0, kind: input, shape index: {}]
  %s1 = inlined_call_operand.vmem [shape: f32[16,20], index: 1, kind: input, shape index: {}]
  %s2 = inlined_call_operand.vmem [shape: f32[16,1], index: 2, kind: input, shape index: {}]
  %s3 = inlined_call_operand.vmem [shape: f32[8,16], index: 3, kind: input, shape index: {}]
  %s4 = inlined_call_operand.vmem [shape: f32[8,1], index: 4, kind: input, shape index: {}]
  %s5 = inlined_call_operand.vmem [shape: f32[4,8], index: 5, kind: input, shape index: {}]
  %s6 = inlined_call_operand.vmem [shape: f32[4,1], index: 6, kind: input, shape index: {}]
  %s7 = inlined_call_operand.vmem [shape: f32[8,4], index: 7, kind: output, shape index: {}]
  %s8 = sld [smem:[#allocation0]]
  $region38: #{tpu_custom_call.1} parent=0
    _
  %s10 = ssub.s32 1, %s8
  %s11 = scalar_select 0, %s10, %s8
  // Predicated region
  $region2: #{tpu_custom_call.1} parent=0 // pred_check
    _
  $region3: #{tpu_custom_call.1} parent=0 // pred_check_branch
    %13 = sbr.rel (0) target = $region5
  $region4: #{tpu_custom_call.1} parent=0 // pred_region
    _
  $region5: #{tpu_custom_call.1} parent=0 // pred_fallthru
    _
  // Predicated region
  $region6: #{tpu_custom_call.1} parent=0 // pred_check
    _
  $region7: #{tpu_custom_call.1} parent=0 // pred_check_branch
    %15 = sbr.rel (0) target = $region9
  $region8: #{tpu_custom_call.1} parent=0 // pred_region
    _
  $region9: #{tpu_custom_call.1} parent=0 // pred_fallthru
    _
  // Predicated region
  $region10: #{tpu_custom_call.1} parent=0 // pred_check
    _
  $region11: #{tpu_custom_call.1} parent=0 // pred_check_branch
    %17 = sbr.rel (0) target = $region13
  $region12: #{tpu_custom_call.1} parent=0 // pred_region
    _
  $region13: #{tpu_custom_call.1} parent=0 // pred_fallthru
    _
  // Predicated region
  $region14: #{tpu_custom_call.1} parent=0 // pred_check
    _
  $region15: #{tpu_custom_call.1} parent=0 // pred_check_branch
    %19 = sbr.rel (0) target = $region17
  $region16: #{tpu_custom_call.1} parent=0 // pred_region
    _
  $region17: #{tpu_custom_call.1} parent=0 // pred_fallthru
    _
  // Predicated region
  $region18: #{tpu_custom_call.1} parent=0 // pred_check
    _
  $region19: #{tpu_custom_call.1} parent=0 // pred_check_branch
    %21 = sbr.rel (0) target = $region21
  $region20: #{tpu_custom_call.1} parent=0 // pred_region
    _
  $region21: #{tpu_custom_call.1} parent=0 // pred_fallthru
    _
  // Predicated region
  $region22: #{tpu_custom_call.1} parent=0 // pred_check
    _
  $region23: #{tpu_custom_call.1} parent=0 // pred_check_branch
    %23 = sbr.rel (0) target = $region25
  $region24: #{tpu_custom_call.1} parent=0 // pred_region
    _
  $region25: #{tpu_custom_call.1} parent=0 // pred_fallthru
    _
  // Predicated region
  $region26: #{tpu_custom_call.1} parent=0 // pred_check
    _
  $region27: #{tpu_custom_call.1} parent=0 // pred_check_branch
    %25 = sbr.rel (0) target = $region29
  $region28: #{tpu_custom_call.1} parent=0 // pred_region
    _
  $region29: #{tpu_custom_call.1} parent=0 // pred_fallthru
    _
  %v26 = vld [vmem:[%s0] sm:$0xff]
  %v27 = vld [vmem:[%s1] sm:$0xff]
  %v28 = vld [vmem:[%s1 + $0x8] sm:$0xff]
  %v29 = vld [vmem:[%s2] sm:$0xff]
  %v30 = vld [vmem:[%s2 + $0x8] sm:$0xff]
  %32 = vset.pattern.permute.xlu0 0
  %33 = vperm.xlu0 %32, %v29
  %v34 = vpop.permute.xlu0 %33
  %37 = vset.pattern.permute.xlu0 0
  %38 = vperm.xlu0 %37, %v30
  %v39 = vpop.permute.xlu0 %38
  %vm41 = vcmask 162816
  %v43 = vsel %vm41, %v27, 0
  %v46 = vsel %vm41, %v28, 0
  %v49 = vsel %vm41, %v26, 0
  %51 = vmatprep.subr.mxu0 0.0
  %52 = vmatpush1.xpose.msra.mxu0 %v49
  %53 = vmatprep.subr.mxu0 0.0
  %54 = vmatpush1.xpose.msra.mxu0 0.0
  %55 = vmatprep.subr.mxu0 0.0
  %56 = vmatpush1.xpose.msra.mxu0 0.0
  %57 = vmatprep.subr.mxu0 0.0
  %58 = vmatpush1.xpose.msra.mxu0 0.0
  %59 = vmatprep.subr.mxu0 0.0
  %60 = vmatpush1.xpose.msra.mxu0 0.0
  %61 = vmatprep.subr.mxu0 0.0
  %62 = vmatpush1.xpose.msra.mxu0 0.0
  %63 = vmatprep.subr.mxu0 0.0
  %64 = vmatpush1.xpose.msra.mxu0 0.0
  %65 = vmatprep.subr.mxu0 0.0
  %66 = vmatpush1.xpose.msra.mxu0 0.0
  %67 = vmatprep.subr.mxu0 0.0
  %68 = vmatpush1.xpose.msra.mxu0 0.0
  %69 = vmatprep.subr.mxu0 0.0
  %70 = vmatpush1.xpose.msra.mxu0 0.0
  %71 = vmatprep.subr.mxu0 0.0
  %72 = vmatpush1.xpose.msra.mxu0 0.0
  %73 = vmatprep.subr.mxu0 0.0
  %74 = vmatpush1.xpose.msra.mxu0 0.0
  %75 = vmatprep.subr.mxu0 0.0
  %76 = vmatpush1.xpose.msra.mxu0 0.0
  %77 = vmatprep.subr.mxu0 0.0
  %78 = vmatpush1.xpose.msra.mxu0 0.0
  %79 = vmatprep.subr.mxu0 0.0
  %80 = vmatpush1.xpose.msra.mxu0 0.0
  %81 = vmatprep.subr.mxu0 0.0
  %82 = vmatpush1.xpose.msra.mxu0 0.0
  %83 = vmatprep.subr.mxu0 0.0
  %84 = vmatpush1.xpose.msra.mxu0 0.0
  %85 = vmatprep.subr.mxu0 0.0
  %86 = vmatpush1.xpose.msra.mxu0 0.0
  %87 = vmatprep.subr.mxu0 0.0
  %88 = vmatpush1.xpose.msra.mxu0 0.0
  %89 = vmatprep.subr.mxu0 0.0
  %90 = vmatpush1.xpose.msra.mxu0 0.0
  %91 = vmatprep.subr.mxu0 0.0
  %92 = vmatpush1.xpose.msra.mxu0 0.0
  %93 = vmatprep.subr.mxu0 0.0
  %94 = vmatpush1.xpose.msra.mxu0 0.0
  %95 = vmatprep.subr.mxu0 0.0
  %96 = vmatpush1.xpose.msra.mxu0 0.0
  %97 = vmatprep.subr.mxu0 0.0
  %98 = vmatpush1.xpose.msra.mxu0 0.0
  %99 = vmatprep.subr.mxu0 0.0
  %100 = vmatpush1.xpose.msra.mxu0 0.0
  %101 = vmatprep.subr.mxu0 0.0
  %102 = vmatpush1.xpose.msra.mxu0 0.0
  %103 = vmatprep.subr.mxu0 0.0
  %104 = vmatpush1.xpose.msra.mxu0 0.0
  %105 = vmatprep.subr.mxu0 0.0
  %106 = vmatpush1.xpose.msra.mxu0 0.0
  %107 = vmatprep.subr.mxu0 0.0
  %108 = vmatpush1.xpose.msra.mxu0 0.0
  %109 = vmatprep.subr.mxu0 0.0
  %110 = vmatpush1.xpose.msra.mxu0 0.0
  %111 = vmatprep.subr.mxu0 0.0
  %112 = vmatpush1.xpose.msra.mxu0 0.0
  %113 = vmatprep.subr.mxu0 0.0
  %114 = vmatpush1.xpose.msra.mxu0 0.0
  %115 = vmatprep.mubr.f32.mxu0 0.0
  %116 = vmatmul.mubr.f32.gmra.mrb[0].mxu0 %v43
  %v117 = vpop.f32.mrb[0].mxu0
  %v118 = vadd.f32 %v34, %v117
  %v119 = vpop.f32.mrb[0].mxu0
  %120 = vmatprep.mubr.f32.mxu0 0.0
  %121 = vmatmul.mubr.f32.gmra.mrb[0].mxu0 %v46
  %v122 = vpop.f32.mrb[0].mxu0
  %v123 = vadd.f32 %v39, %v122
  %v124 = vpop.f32.mrb[0].mxu0
  %125 = vdwg.mxu0
  %v126 = vmax.f32 %v118, 0.0
  %v127 = vmax.f32 %v123, 0.0
  %v128 = vld [vmem:[%s3] sm:$0xff]
  %v129 = vld [vmem:[%s4] sm:$0xff]
  %131 = vset.pattern.permute.xlu0 0
  %132 = vperm.xlu0 %131, %v129
  %v133 = vpop.permute.xlu0 %132
  %vm135 = vcmask 130048
  %v137 = vsel %vm135, %v128, 0
  %139 = vmatprep.subr.mxu0 0.0
  %140 = vmatpush1.msra.mxu0 %v126
  %141 = vmatprep.subr.mxu0 0.0
  %142 = vmatpush1.msra.mxu0 %v127
  %143 = vmatprep.subr.mxu0 0.0
  %144 = vmatpush1.msra.mxu0 0.0
  %145 = vmatprep.subr.mxu0 0.0
  %146 = vmatpush1.msra.mxu0 0.0
  %147 = vmatprep.subr.mxu0 0.0
  %148 = vmatpush1.msra.mxu0 0.0
  %149 = vmatprep.subr.mxu0 0.0
  %150 = vmatpush1.msra.mxu0 0.0
  %151 = vmatprep.subr.mxu0 0.0
  %152 = vmatpush1.msra.mxu0 0.0
  %153 = vmatprep.subr.mxu0 0.0
  %154 = vmatpush1.msra.mxu0 0.0
  %155 = vmatprep.subr.mxu0 0.0
  %156 = vmatpush1.msra.mxu0 0.0
  %157 = vmatprep.subr.mxu0 0.0
  %158 = vmatpush1.msra.mxu0 0.0
  %159 = vmatprep.subr.mxu0 0.0
  %160 = vmatpush1.msra.mxu0 0.0
  %161 = vmatprep.subr.mxu0 0.0
  %162 = vmatpush1.msra.mxu0 0.0
  %163 = vmatprep.subr.mxu0 0.0
  %164 = vmatpush1.msra.mxu0 0.0
  %165 = vmatprep.subr.mxu0 0.0
  %166 = vmatpush1.msra.mxu0 0.0
  %167 = vmatprep.subr.mxu0 0.0
  %168 = vmatpush1.msra.mxu0 0.0
  %169 = vmatprep.subr.mxu0 0.0
  %170 = vmatpush1.msra.mxu0 0.0
  %171 = vmatprep.subr.mxu0 0.0
  %172 = vmatpush1.msra.mxu0 0.0
  %173 = vmatprep.subr.mxu0 0.0
  %174 = vmatpush1.msra.mxu0 0.0
  %175 = vmatprep.subr.mxu0 0.0
  %176 = vmatpush1.msra.mxu0 0.0
  %177 = vmatprep.subr.mxu0 0.0
  %178 = vmatpush1.msra.mxu0 0.0
  %179 = vmatprep.subr.mxu0 0.0
  %180 = vmatpush1.msra.mxu0 0.0
  %181 = vmatprep.subr.mxu0 0.0
  %182 = vmatpush1.msra.mxu0 0.0
  %183 = vmatprep.subr.mxu0 0.0
  %184 = vmatpush1.msra.mxu0 0.0
  %185 = vmatprep.subr.mxu0 0.0
  %186 = vmatpush1.msra.mxu0 0.0
  %187 = vmatprep.subr.mxu0 0.0
  %188 = vmatpush1.msra.mxu0 0.0
  %189 = vmatprep.subr.mxu0 0.0
  %190 = vmatpush1.msra.mxu0 0.0
  %191 = vmatprep.subr.mxu0 0.0
  %192 = vmatpush1.msra.mxu0 0.0
  %193 = vmatprep.subr.mxu0 0.0
  %194 = vmatpush1.msra.mxu0 0.0
  %195 = vmatprep.subr.mxu0 0.0
  %196 = vmatpush1.msra.mxu0 0.0
  %197 = vmatprep.subr.mxu0 0.0
  %198 = vmatpush1.msra.mxu0 0.0
  %199 = vmatprep.subr.mxu0 0.0
  %200 = vmatpush1.msra.mxu0 0.0
  %201 = vmatprep.subr.mxu0 0.0
  %202 = vmatpush1.msra.mxu0 0.0
  %203 = vmatprep.mubr.f32.mxu0 0.0
  %204 = vmatmul.mubr.f32.gmra.mrb[0].mxu0 %v137
  %v205 = vpop.f32.mrb[0].mxu0
  %v206 = vadd.f32 %v133, %v205
  %v207 = vpop.f32.mrb[0].mxu0
  %208 = vdwg.mxu0
  %v209 = vmax.f32 %v206, 0.0
  %v210 = vld [vmem:[%s5] sm:$0xf]
  %v211 = vld [vmem:[%s6] sm:$0xf]
  %213 = vset.pattern.permute.xlu0 0
  %214 = vperm.xlu0 %213, %v211
  %v215 = vpop.permute.xlu0 %214
  %vm217 = vcmask 64512
  %v219 = vsel %vm217, %v210, 0
  %221 = vmatprep.subr.mxu0 0.0
  %222 = vmatpush1.msra.mxu0 %v209
  %223 = vmatprep.subr.mxu0 0.0
  %224 = vmatpush1.msra.mxu0 0.0
  %225 = vmatprep.subr.mxu0 0.0
  %226 = vmatpush1.msra.mxu0 0.0
  %227 = vmatprep.subr.mxu0 0.0
  %228 = vmatpush1.msra.mxu0 0.0
  %229 = vmatprep.subr.mxu0 0.0
  %230 = vmatpush1.msra.mxu0 0.0
  %231 = vmatprep.subr.mxu0 0.0
  %232 = vmatpush1.msra.mxu0 0.0
  %233 = vmatprep.subr.mxu0 0.0
  %234 = vmatpush1.msra.mxu0 0.0
  %235 = vmatprep.subr.mxu0 0.0
  %236 = vmatpush1.msra.mxu0 0.0
  %237 = vmatprep.subr.mxu0 0.0
  %238 = vmatpush1.msra.mxu0 0.0
  %239 = vmatprep.subr.mxu0 0.0
  %240 = vmatpush1.msra.mxu0 0.0
  %241 = vmatprep.subr.mxu0 0.0
  %242 = vmatpush1.msra.mxu0 0.0
  %243 = vmatprep.subr.mxu0 0.0
  %244 = vmatpush1.msra.mxu0 0.0
  %245 = vmatprep.subr.mxu0 0.0
  %246 = vmatpush1.msra.mxu0 0.0
  %247 = vmatprep.subr.mxu0 0.0
  %248 = vmatpush1.msra.mxu0 0.0
  %249 = vmatprep.subr.mxu0 0.0
  %250 = vmatpush1.msra.mxu0 0.0
  %251 = vmatprep.subr.mxu0 0.0
  %252 = vmatpush1.msra.mxu0 0.0
  %253 = vmatprep.subr.mxu0 0.0
  %254 = vmatpush1.msra.mxu0 0.0
  %255 = vmatprep.subr.mxu0 0.0
  %256 = vmatpush1.msra.mxu0 0.0
  %257 = vmatprep.subr.mxu0 0.0
  %258 = vmatpush1.msra.mxu0 0.0
  %259 = vmatprep.subr.mxu0 0.0
  %260 = vmatpush1.msra.mxu0 0.0
  %261 = vmatprep.subr.mxu0 0.0
  %262 = vmatpush1.msra.mxu0 0.0
  %263 = vmatprep.subr.mxu0 0.0
  %264 = vmatpush1.msra.mxu0 0.0
  %265 = vmatprep.subr.mxu0 0.0
  %266 = vmatpush1.msra.mxu0 0.0
  %267 = vmatprep.subr.mxu0 0.0
  %268 = vmatpush1.msra.mxu0 0.0
  %269 = vmatprep.subr.mxu0 0.0
  %270 = vmatpush1.msra.mxu0 0.0
  %271 = vmatprep.subr.mxu0 0.0
  %272 = vmatpush1.msra.mxu0 0.0
  %273 = vmatprep.subr.mxu0 0.0
  %274 = vmatpush1.msra.mxu0 0.0
  %275 = vmatprep.subr.mxu0 0.0
  %276 = vmatpush1.msra.mxu0 0.0
  %277 = vmatprep.subr.mxu0 0.0
  %278 = vmatpush1.msra.mxu0 0.0
  %279 = vmatprep.subr.mxu0 0.0
  %280 = vmatpush1.msra.mxu0 0.0
  %281 = vmatprep.subr.mxu0 0.0
  %282 = vmatpush1.msra.mxu0 0.0
  %283 = vmatprep.subr.mxu0 0.0
  %284 = vmatpush1.msra.mxu0 0.0
  %285 = vmatprep.mubr.f32.mxu0 0.0
  %286 = vmatmul.mubr.f32.gmra.mrb[0].mxu0 %v219
  %v287 = vpop.f32.mrb[0].mxu0
  %v288 = vadd.f32 %v215, %v287
  %v289 = vpop.f32.mrb[0].mxu0
  %290 = vdwg.mxu0
  %vm291 = vcmask 60416
  %v292 = vsel %vm291, %v288, -inf
  %v293 = vrot.slane %v292, 4
  %v294 = vmax.f32 %v292, %v293
  %v295 = vrot.slane %v294, 2
  %v296 = vmax.f32 %v294, %v295
  %v297 = vrot.slane %v296, 1
  %v298 = vmax.f32 %v296, %v297
  %v299 = vsub.f32 %v288, %v298
  %v300 = vmul.f32 %v299, 1.442695
  %v301 = vpow.pop %v300
  %v302 = vsel %vm291, %v301, 0.0
  %v303 = vrot.slane %v302, 4
  %v304 = vadd.f32 %v302, %v303
  %v305 = vrot.slane %v304, 2
  %v306 = vadd.f32 %v304, %v305
  %v307 = vrot.slane %v306, 1
  %v308 = vadd.f32 %v306, %v307
  %v309 = vrcp.pop %v308
  %v310 = vmul.f32 %v301, %v309
  %311 = vxpose.xlu0.b32.start [1/16] %v310, 128
  %312 = vxpose.xlu0.b32.cont [2/16] 0.0, 128
  %313 = vxpose.xlu0.b32.cont [3/16] 0.0, 128
  %314 = vxpose.xlu0.b32.cont [4/16] 0.0, 128
  %315 = vxpose.xlu0.b32.cont [5/16] 0.0, 128
  %316 = vxpose.xlu0.b32.cont [6/16] 0.0, 128
  %317 = vxpose.xlu0.b32.cont [7/16] 0.0, 128
  %318 = vxpose.xlu0.b32.cont [8/16] 0.0, 128
  %319 = vxpose.xlu0.b32.cont [9/16] 0.0, 128
  %320 = vxpose.xlu0.b32.cont [10/16] 0.0, 128
  %321 = vxpose.xlu0.b32.cont [11/16] 0.0, 128
  %322 = vxpose.xlu0.b32.cont [12/16] 0.0, 128
  %323 = vxpose.xlu0.b32.cont [13/16] 0.0, 128
  %324 = vxpose.xlu0.b32.cont [14/16] 0.0, 128
  %325 = vxpose.xlu0.b32.cont [15/16] 0.0, 128
  %326 = vxpose.xlu0.b32.end [16/16] 0.0, 128
  %v327 = vpop.trf.xlu0
  %v328 = vpop.trf.xlu0
  %v329 = vpop.trf.xlu0
  %v330 = vpop.trf.xlu0
  %v331 = vpop.trf.xlu0
  %v332 = vpop.trf.xlu0
  %v333 = vpop.trf.xlu0
  %v334 = vpop.trf.xlu0
  %v335 = vpop.trf.xlu0
  %v336 = vpop.trf.xlu0
  %v337 = vpop.trf.xlu0
  %v338 = vpop.trf.xlu0
  %v339 = vpop.trf.xlu0
  %v340 = vpop.trf.xlu0
  %v341 = vpop.trf.xlu0
  %v342 = vpop.trf.xlu0
  %vm343 = vcmask 31744
  %344 = vst.msk [vmem:[%s7] sm:$0xff] %vm343, %v327
  // Predicated region
  $region30: #{tpu_custom_call.1} parent=0 // pred_check
    _
  $region31: #{tpu_custom_call.1} parent=0 // pred_check_branch
    %346 = sbr.rel (0) target = $region33
  $region32: #{tpu_custom_call.1} parent=0 // pred_region
    _
  $region33: #{tpu_custom_call.1} parent=0 // pred_fallthru
    _
  // Predicated region
  $region34: #{tpu_custom_call.1} parent=0 // pred_check
    _
  $region35: #{tpu_custom_call.1} parent=0 // pred_check_branch
    %348 = sbr.rel (0) target = $region37
  $region36: #{tpu_custom_call.1} parent=0 // pred_region
    _
  $region37: #{tpu_custom_call.1} parent=0 // pred_fallthru
    _

</llo_original>
